<compile_context>
chip_gen: v6e
topology: v6e:2x2x1
jax: 0.10.0
libtpu: 0.0.40
codegen_flags: <defaults>
</compile_context>

<pallas_src>
import functools

import jax
import jax.numpy as jnp
from jax import lax
from jax.experimental import pallas as pl
from jax.experimental.pallas import tpu as pltpu


_LANE = 128                 # minor-dim (lane) granule
_TILE_BYTES_HI = 8 << 20    # upper bound for one streamed feature tile
_SLACK_BYTES = 4 << 20      # headroom for compiler temporaries


def _round_down_lane(x):
    return max(_LANE, (x // _LANE) * _LANE)


def _vmem_capacity_bytes():
    """Physical VMEM of this generation (v5e/v6e: 128 MiB, v7x: 64 MiB)."""
    try:
        cap = int(pltpu.get_tpu_info().vmem_capacity_bytes)
        if cap > 0:
            return cap
    except Exception:
        pass
    return 64 << 20  # v7x has the smallest VMEM -> safest fallback


def _num_tensorcores():
    """Best-effort TensorCore count per chip (v7x: 2). Fallback 1 is always correct."""
    candidates = []
    try:
        candidates.append(pltpu.get_tpu_info())
    except Exception:
        pass
    try:
        candidates.append(jax.devices()[0])
    except Exception:
        pass
    for obj in candidates:
        for attr in ("num_cores", "core_count", "num_tensorcores"):
            try:
                v = getattr(obj, attr, None)
            except Exception:
                v = None
            if isinstance(v, int) and 1 <= v <= 8:
                return v
    return 1


def _plan(x, tk_max, num_k_splits):
    """Tiling plan. The NCHW -> (N, M) view is a pure metadata reshape: no
    host-side padding, no extra HBM pass (review item 1)."""
    a, b, c, d = x.shape
    n, m = a * b, c * d
    feats = x.reshape(n, m)
    itemsize = feats.dtype.itemsize

    cap = _vmem_capacity_bytes()
    resident = 2 * n * n * 4            # resident f32 gram (out/acc) + target / dbl-buffer
    usable = int(cap * 0.7) - resident - _SLACK_BYTES

    # Adaptive reduction tile: as wide as the budget allows, 2-8 MiB sweet spot.
    per_tile = min(max(usable // 2, _LANE * n * itemsize), _TILE_BYTES_HI)
    tk = _round_down_lane(per_tile // (n * itemsize))
    if tk_max is not None:
        tk = min(tk, _round_down_lane(int(tk_max)))
    if tk >= m:
        tk = m                           # single full-width block (full minor dim => exempt from 128 rule)
    else:
        tk = _round_down_lane(min(tk, m))
    kt = -(-m // tk)                     # number of K blocks
    ragged = (m % tk) != 0

    # Optional split of the K reduction across TensorCores (v7x megacore, item 8).
    split = _num_tensorcores() if num_k_splits is None else int(num_k_splits)
    split = max(1, min(split, 2, kt))
    kpc = -(-kt // split)                # K blocks per core
    ragged = ragged or (split * kpc != kt)   # phantom trailing blocks are fully masked

    # Pipeline depth: triple-buffer tiny tiles when VMEM is plentiful (v5e/v6e).
    tile_bytes = n * tk * itemsize
    n_buf = 3 if (kt >= 4 and tile_bytes <= (1 << 20) and usable > 4 * tile_bytes) else 2

    vmem_limit = n_buf * tile_bytes + resident + _SLACK_BYTES
    vmem_limit = int(min(int(cap * 0.95), max(16 << 20, vmem_limit)))
    # TODO(synk): for very large N = a*b (~>2.5k on v7x) the resident (N, N) gram no
    # longer fits VMEM; an output-row-tiled grid (N//tn, K) path would be needed.

    return feats, dict(n=n, m=m, tk=tk, kt=kt, split=split, kpc=kpc, ragged=ragged,
                       n_buf=n_buf, vmem_limit=vmem_limit, itemsize=itemsize,
                       norm=float(a * b * c * d))


def _feat_spec(n, tk, index_map, n_buf):
    if n_buf == 2:
        return pl.BlockSpec((n, tk), index_map)
    return pl.BlockSpec((n, tk), index_map, pipeline_mode=pl.Buffered(n_buf))


# ---------------------------------------------------------------------------
# In-kernel helpers
# ---------------------------------------------------------------------------
def _load_tile(feat_ref, k_global, *, tk, m, ragged, bf16_operands):
    """Load the current (N, TK) feature tile; zero columns past M (ragged tail of
    the last K block / phantom blocks of the core split).  `ragged` is a static
    Python bool, so exact layouts pay no masking cost."""
    f = feat_ref[...]
    if ragged:
        col = k_global * tk + lax.broadcasted_iota(jnp.int32, f.shape, 1)
        f = jnp.where(col < m, f, jnp.zeros_like(f))
    if bf16_operands and f.dtype != jnp.bfloat16:
        # Opt-in: native bf16 MXU passes (~3-4x faster than emulated f32 matmul).
        # Keep features bf16 in HBM end-to-end to also halve the streamed bytes.
        f = f.astype(jnp.bfloat16)
    return f


def _ff_t(f):
    # F @ F^T: both operands contract on their last (lane) dim, so we never build
    # a transposed copy of the tile ourselves.
    # TODO(synk): inspect pl.lower_as_mlir for a Mosaic-inserted per-step XLU
    # transpose of the RHS; if present, a DMA-side layout change would be better
    # on compute-bound (large-N) shapes.
    return lax.dot_general(f, f, dimension_numbers=(((1,), (1,)), ((), ())),
                           preferred_element_type=jnp.float32)


# ---------------------------------------------------------------------------
# Kernel 1: per-core partial gram.  grid = (split, K_blocks_per_core)
#   * output block (N, N) is resident across the (arbitrary) K axis and is the
#     accumulator itself — no scratch, normalization applied in place (item 6).
#   * leading "parallel" axis lets v7x run the two halves of K on its 2 TCs.
# ---------------------------------------------------------------------------
def _gram_partial_kernel(feat_ref, g_ref, *, tk, m, kpc, inv_norm, ragged,
                         bf16_operands):
    s = pl.program_id(0)          # core-split index (parallel)
    k = pl.program_id(1)          # reduction step  (arbitrary)

    @pl.when(k == 0)
    def _():
        g_ref[...] = jnp.zeros_like(g_ref)

    gk = s * kpc + k              # global K-block index
    f = _load_tile(feat_ref, gk, tk=tk, m=m, ragged=ragged,
                   bf16_operands=bf16_operands)
    g_ref[...] += _ff_t(f)        # accumulate straight into the resident output

    @pl.when(k == kpc - 1)
    def _():
        g_ref[...] = g_ref[...] * inv_norm


def _gram_partials(feats, p, *, bf16_operands):
    n, m, tk, kt = p["n"], p["m"], p["tk"], p["kt"]
    split, kpc = p["split"], p["kpc"]

    # Clamp phantom block indices in-bounds; their contribution is fully masked.
    feat_idx = lambda s, k: (0, jnp.minimum(s * kpc + k, kt - 1))

    kernel = functools.partial(
        _gram_partial_kernel, tk=tk, m=m, kpc=kpc, inv_norm=1.0 / p["norm"],
        ragged=p["ragged"], bf16_operands=bf16_operands)

    return pl.pallas_call(
        kernel,
        out_shape=jax.ShapeDtypeStruct((split, n, n), jnp.float32),
        grid_spec=pltpu.PrefetchScalarGridSpec(
            num_scalar_prefetch=0,
            grid=(split, kpc),
            in_specs=[_feat_spec(n, tk, feat_idx, p["n_buf"])],
            out_specs=pl.BlockSpec((None, n, n), lambda s, k: (s, 0, 0)),
        ),
        compiler_params=pltpu.CompilerParams(
            dimension_semantics=("parallel", "arbitrary"),
            vmem_limit_bytes=p["vmem_limit"]),
        cost_estimate=pl.CostEstimate(
            flops=2 * n * n * m, transcendentals=0,
            bytes_accessed=n * m * p["itemsize"] + split * n * n * 4),
    )(feats)


# ---------------------------------------------------------------------------
# Kernel 2: fused gram + MSE against a precomputed target gram (single core).
#   The gram lives only in a VMEM accumulator; only the scalar loss leaves chip.
#   The invariant target is a single whole-array VMEM copy (no double buffer).
# ---------------------------------------------------------------------------
def _style_loss_kernel(feat_ref, tgt_ref, loss_ref, acc_ref, *, tk, m, inv_norm,
                       inv_count, ragged, bf16_operands):
    k = pl.program_id(0)

    @pl.when(k == 0)
    def _():
        acc_ref[...] = jnp.zeros_like(acc_ref)

    f = _load_tile(feat_ref, k, tk=tk, m=m, ragged=ragged,
                   bf16_operands=bf16_operands)
    acc_ref[...] += _ff_t(f)

    @pl.when(k == pl.num_programs(0) - 1)
    def _():
        diff = acc_ref[...] * inv_norm - tgt_ref[...]
        ssq = jnp.sum(diff * diff, axis=1, keepdims=True)        # (N, 1)
        loss_ref[...] = jnp.sum(ssq, axis=0, keepdims=True) * inv_count


# ---------------------------------------------------------------------------
# Public API
# ---------------------------------------------------------------------------
def gram_matrix(x, *, tk_max=None, num_k_splits=None, bf16_operands=False):
    """x: (a, b, c, d) NCHW -> (a*b, a*b) float32 gram matrix / (a*b*c*d)."""
    feats, p = _plan(x, tk_max, num_k_splits)
    parts = _gram_partials(feats, p, bf16_operands=bf16_operands)
    return parts[0] if p["split"] == 1 else parts.sum(axis=0)


def style_loss(x, target_gram, *, tk_max=None, num_k_splits=None,
               bf16_operands=False):
    """Returns (x_passthrough, scalar_loss) mimicking StyleLoss.forward."""
    feats, p = _plan(x, tk_max, num_k_splits)
    n, m, tk, kt = p["n"], p["m"], p["tk"], p["kt"]
    target_gram = target_gram.astype(jnp.float32)

    if p["split"] > 1:
        # Megacore path: per-core partial grams, tiny O(N^2) XLA combine.  The
        # extra (split, N, N) writeback is negligible next to the N*M stream.
        g = _gram_partials(feats, p, bf16_operands=bf16_operands).sum(axis=0)
        return x, jnp.mean(jnp.square(g - target_gram))

    kernel = functools.partial(
        _style_loss_kernel, tk=tk, m=m, inv_norm=1.0 / p["norm"],
        inv_count=1.0 / float(n * n), ragged=p["ragged"],
        bf16_operands=bf16_operands)

    loss_arr = pl.pallas_call(
        kernel,
        out_shape=jax.ShapeDtypeStruct((1, 1), jnp.float32),
        grid_spec=pltpu.PrefetchScalarGridSpec(
            num_scalar_prefetch=0,
            grid=(kt,),
            in_specs=[
                _feat_spec(n, tk, lambda k: (0, k), p["n_buf"]),
                # invariant target gram: single whole-array VMEM copy — no
                # per-step DMA, no default double buffer (review item 5)
                pl.BlockSpec(memory_space=pltpu.MemorySpace.VMEM),
            ],
            out_specs=pl.BlockSpec((1, 1), lambda k: (0, 0)),
            scratch_shapes=[pltpu.VMEM((n, n), jnp.float32)],
        ),
        compiler_params=pltpu.CompilerParams(
            dimension_semantics=("arbitrary",),
            vmem_limit_bytes=p["vmem_limit"]),
        cost_estimate=pl.CostEstimate(
            flops=2 * n * n * m, transcendentals=0,
            bytes_accessed=n * m * p["itemsize"] + n * n * 4 + 4),
    )(feats, target_gram)
    return x, loss_arr[0, 0]


class StyleLoss:
    """JAX/Pallas port of the PyTorch StyleLoss module (forward pass)."""

    def __init__(self, target_feature, *, tk_max=None, num_k_splits=None,
                 bf16_operands=False):
        self._tk_max = tk_max
        self._num_k_splits = num_k_splits
        self._bf16 = bf16_operands
        # .detach() -> stop_gradient on a constant
        self.target = jax.lax.stop_gradient(
            gram_matrix(target_feature, tk_max=tk_max, num_k_splits=num_k_splits,
                        bf16_operands=bf16_operands))
        self.loss = None

    def __call__(self, x):
        # TODO(synk): backward pass needs a custom_vjp
        # (dL/dF = 4/(N^2 * a*b*c*d) * (G - T) @ F); forward-only here.
        out, loss = style_loss(x, self.target, tk_max=self._tk_max,
                               num_k_splits=self._num_k_splits,
                               bf16_operands=self._bf16)
        self.loss = loss
        return out


# ---------------------------------------------------------------------------
# Pure-JAX reference for verification
# ---------------------------------------------------------------------------
def _gram_ref(x):
    a, b, c, d = x.shape
    f = x.reshape(a * b, c * d).astype(jnp.float32)
    g = jnp.matmul(f, f.T, precision=lax.Precision.HIGHEST)
    return g / (a * b * c * d)


def _loss_ref(x, target):
    return jnp.mean((_gram_ref(x) - target) ** 2)


if __name__ == "__main__":
    key = jax.random.PRNGKey(0)
    k1, k2, k3, k4 = jax.random.split(key, 4)

    # Small-integer-valued features keep every matmul path (f32 or bf16 operands,
    # any MXU pass count) exact, so the checks below are tight and portable.
    def mk(k, shape):
        return jax.random.randint(k, shape, -3, 4).astype(jnp.float32)

    # case 1: m = c*d = 256 (multiple of the 128-lane tile), batch=2, channels=4
    tgt1, x1 = mk(k1, (2, 4, 16, 16)), mk(k2, (2, 4, 16, 16))
    # case 2: m = 324 -> ragged last K tile (+ phantom block under a 2-way split)
    tgt2, x2 = mk(k3, (1, 8, 18, 18)), mk(k4, (1, 8, 18, 18))

    checks = []

    # default configuration (auto tile size / auto core split)
    mod = StyleLoss(tgt1)
    out = jax.block_until_ready(mod(x1))
    checks.append(jnp.allclose(out, x1))
    checks.append(jnp.allclose(mod.loss, _loss_ref(x1, _gram_ref(tgt1)),
                               rtol=1e-5, atol=1e-7))

    # forced small K tiles: multi-step reduction on the fused single-core path
    mod = StyleLoss(tgt1, tk_max=128, num_k_splits=1)
    out = jax.block_until_ready(mod(x1))
    checks.append(jnp.allclose(out, x1))
    checks.append(jnp.allclose(mod.loss, _loss_ref(x1, _gram_ref(tgt1)),
                               rtol=1e-5, atol=1e-7))
    checks.append(jnp.allclose(gram_matrix(x1, tk_max=128, num_k_splits=1),
                               _gram_ref(x1), rtol=1e-5, atol=1e-6))

    # K reduction split across 2 cores + ragged / phantom tail masking
    mod = StyleLoss(tgt2, tk_max=128, num_k_splits=2)
    out = jax.block_until_ready(mod(x2))
    checks.append(jnp.allclose(out, x2))
    checks.append(jnp.allclose(mod.loss, _loss_ref(x2, _gram_ref(tgt2)),
                               rtol=1e-5, atol=1e-7))
    checks.append(jnp.allclose(gram_matrix(x2, tk_max=128, num_k_splits=2),
                               _gram_ref(x2), rtol=1e-5, atol=1e-6))

    # opt-in bf16 MXU operands (exact on the small-integer test data)
    mod = StyleLoss(tgt2, tk_max=128, num_k_splits=1, bf16_operands=True)
    out = jax.block_until_ready(mod(x2))
    checks.append(jnp.allclose(mod.loss, _loss_ref(x2, _gram_ref(tgt2)),
                               rtol=1e-4, atol=1e-6))

    assert all(bool(c) for c in checks), [bool(c) for c in checks]
    print("KERNEL_OK")
</pallas_src>

<mosaic_0001>
module attributes {stable_mosaic.version = 11 : i64} {
  func.func @_gram_partial_kernel(%arg0: i32, %arg1: i32, %arg2: memref<8x256xf32, #tpu.memory_space<vmem>>, %arg3: memref<1x8x8xf32, #tpu.memory_space<vmem>>) attributes {dimension_semantics = [#tpu.dimension_semantics<parallel>, #tpu.dimension_semantics<arbitrary>], iteration_bounds = array<i64: 1, 1>, scalar_prefetch = 0 : i64, scratch_operands = 0 : i64, tpu.core_type = #tpu.core_type<tc>, window_params = [{transform_indices = @transform_0, window_bounds = array<i64: 8, 256>}, {transform_indices = @transform_1, window_bounds = array<i64: 1, 8, 8>}]} {
    %c0_i32 = arith.constant 0 : i32
    %0 = arith.cmpi eq, %arg1, %c0_i32 : i32
    %1 = arith.extui %0 : i1 to i32
    %c0_i32_0 = arith.constant 0 : i32
    %2 = arith.cmpi ne, %1, %c0_i32_0 : i32
    scf.if %2 {
      %cst_10 = arith.constant 0.000000e+00 : f32
      %14 = vector.broadcast %cst_10 : f32 to vector<8x8xf32>
      %c0_11 = arith.constant 0 : index
      %c0_12 = arith.constant 0 : index
      %c0_13 = arith.constant 0 : index
      %15 = vector.load %arg3[%c0_11, %c0_12, %c0_13] : memref<1x8x8xf32, #tpu.memory_space<vmem>>, vector<1x8x8xf32>
      %16 = vector.shape_cast %15 : vector<1x8x8xf32> to vector<8x8xf32>
      %17 = vector.shape_cast %14 : vector<8x8xf32> to vector<1x8x8xf32>
      tpu.vector_store %arg3[%c0_11, %c0_12, %c0_13], %17 {strides = array<i32>} : memref<1x8x8xf32, #tpu.memory_space<vmem>>, vector<1x8x8xf32>,
    } else {
    }
    %c0 = arith.constant 0 : index
    %c0_1 = arith.constant 0 : index
    %3 = vector.load %arg2[%c0, %c0_1] : memref<8x256xf32, #tpu.memory_space<vmem>>, vector<8x256xf32>
    %c0_2 = arith.constant 0 : index
    %c0_3 = arith.constant 0 : index
    %c0_4 = arith.constant 0 : index
    %4 = vector.load %arg3[%c0_2, %c0_3, %c0_4] : memref<1x8x8xf32, #tpu.memory_space<vmem>>, vector<1x8x8xf32>
    %5 = vector.shape_cast %4 : vector<1x8x8xf32> to vector<8x8xf32>
    %cst = arith.constant dense<0.000000e+00> : vector<8x8xf32>
    %6 = tpu.matmul %3, %3, %cst {dimension_numbers = #tpu.dot_dimension_numbers<[1], [1], [0], [0], [0, 0, 1, 0], [], []>} : vector<8x256xf32>, vector<8x256xf32>, vector<8x8xf32> -> vector<8x8xf32>
    %7 = arith.addf %5, %6 : vector<8x8xf32>
    %c0_5 = arith.constant 0 : index
    %c0_6 = arith.constant 0 : index
    %c0_7 = arith.constant 0 : index
    %8 = vector.load %arg3[%c0_5, %c0_6, %c0_7] : memref<1x8x8xf32, #tpu.memory_space<vmem>>, vector<1x8x8xf32>
    %9 = vector.shape_cast %8 : vector<1x8x8xf32> to vector<8x8xf32>
    %10 = vector.shape_cast %7 : vector<8x8xf32> to vector<1x8x8xf32>
    tpu.vector_store %arg3[%c0_5, %c0_6, %c0_7], %10 {strides = array<i32>} : memref<1x8x8xf32, #tpu.memory_space<vmem>>, vector<1x8x8xf32>,
    %c0_i32_8 = arith.constant 0 : i32
    %11 = arith.cmpi eq, %arg1, %c0_i32_8 : i32
    %12 = arith.extui %11 : i1 to i32
    %c0_i32_9 = arith.constant 0 : i32
    %13 = arith.cmpi ne, %12, %c0_i32_9 : i32
    scf.if %13 {
      %c0_10 = arith.constant 0 : index
      %c0_11 = arith.constant 0 : index
      %c0_12 = arith.constant 0 : index
      %14 = vector.load %arg3[%c0_10, %c0_11, %c0_12] : memref<1x8x8xf32, #tpu.memory_space<vmem>>, vector<1x8x8xf32>
      %15 = vector.shape_cast %14 : vector<1x8x8xf32> to vector<8x8xf32>
      %cst_13 = arith.constant 4.8828125E-4 : f32
      %16 = vector.broadcast %cst_13 : f32 to vector<8x8xf32>
      %17 = arith.mulf %15, %16 : vector<8x8xf32>
      %c0_14 = arith.constant 0 : index
      %c0_15 = arith.constant 0 : index
      %c0_16 = arith.constant 0 : index
      %18 = vector.load %arg3[%c0_14, %c0_15, %c0_16] : memref<1x8x8xf32, #tpu.memory_space<vmem>>, vector<1x8x8xf32>
      %19 = vector.shape_cast %18 : vector<1x8x8xf32> to vector<8x8xf32>
      %20 = vector.shape_cast %17 : vector<8x8xf32> to vector<1x8x8xf32>
      tpu.vector_store %arg3[%c0_14, %c0_15, %c0_16], %20 {strides = array<i32>} : memref<1x8x8xf32, #tpu.memory_space<vmem>>, vector<1x8x8xf32>,
    } else {
    }
    return
  }
  func.func @transform_0(%arg0: i32, %arg1: i32) -> (i32, i32) {
    %c1_i32 = arith.constant 1 : i32
    %0 = arith.muli %arg0, %c1_i32 : i32
    %1 = arith.addi %0, %arg1 : i32
    %c0_i32 = arith.constant 0 : i32
    %2 = arith.minsi %1, %c0_i32 : i32
    %c0_i32_0 = arith.constant 0 : i32
    %c0_i32_1 = arith.constant 0 : i32
    return %c0_i32_0, %2 : i32, i32
  }
  func.func @transform_1(%arg0: i32, %arg1: i32) -> (i32, i32, i32) {
    %c0_i32 = arith.constant 0 : i32
    %c0_i32_0 = arith.constant 0 : i32
    %c0_i32_1 = arith.constant 0 : i32
    return %arg0, %c0_i32, %c0_i32_0 : i32, i32, i32
  }
}

</mosaic_0001>

<llo_original>
// kernel: tpu_custom_call.1
$region0: #{tpu_custom_call.1}
  #allocation0 [shape = 'u32[]', space=smem, size = 0x4, offset = 0x4, fixed_abs, tag = 'smem constant byte address 0x4 - core index']
  #allocation1 [shape = 'u32[144,128]{1,0:T(1,128)}', space=vmem, size = 0x12000, scoped, tag = 'internal scratch']
  %s0 = inlined_call_operand.hbm [shape: f32[8,256], index: 0, kind: input, shape index: {}]
  %s1 = inlined_call_operand.hbm [shape: f32[1,8,8], index: 1, kind: output, shape index: {}]
  %s2 = sld [smem:[#allocation0]]
  $region26: #{tpu_custom_call.1} parent=0
    _
  %s4 = ssub.s32 1, %s2
  %s5 = scalar_select 0, %s4, %s2
  $region1: #{tpu_custom_call.1} parent=0
    #allocation2 [shape = 'u8[8192]{0}', space=vmem, size = 0x2000, scoped, tag = 'input window, operand 0, single buffered']
    #allocation3 [shape = 's32[1]{0}', space=sflag, size = 0x4, scoped, tag = 'scoped memory for tpu_custom_call.1']
    #allocation4 [shape = 's32[1]{0}', space=sflag, size = 0x4, scoped, tag = 'scoped memory for tpu_custom_call.1']
    #allocation5 [shape = 'u8[4096]{0}', space=vmem, size = 0x1000, scoped, tag = 'output window, operand 0, single buffered']
    %6 = vsyncpa [#allocation3], 0
    %7 = vsyncpa [#allocation4], 0
    // Predicated region
    $region2: #{tpu_custom_call.1} parent=1 // pred_check
      _
    $region3: #{tpu_custom_call.1} parent=1 // pred_check_branch
      %9 = sbr.rel (0) target = $region5
    $region4: #{tpu_custom_call.1} parent=1 // pred_region
      %s10 = sadd.s32 0, 0
      %p11 = scmp.lt.s32.totalorder %s10, 0
      %s12 = scalar_select %p11, %s10, 0
      %s13 = smul.u32 2, %s12
      %s15 = ssub.s32 256, 256
      %16 = vsyncadd [#allocation3], %s15
      %s17 = smul.addr %s13, 128
      %s18 = scalar_lea.hbm %s0, %s17
      %s20 = sshll.u32 [#allocation2], 4
      %s21 = int_to_ptr.vmem [resolvable:$true] %s20
      %23 = dma.hbm_to_vmem [thread:$0]  %s18, 256, %s21, [#allocation3]
    $region5: #{tpu_custom_call.1} parent=1 // pred_fallthru
      _
    // Predicated region
    $region6: #{tpu_custom_call.1} parent=1 // pred_check
      _
    $region7: #{tpu_custom_call.1} parent=1 // pred_check_branch
      %25 = sbr.rel (0) target = $region9
    $region8: #{tpu_custom_call.1} parent=1 // pred_region
      %26 = dma.done [#allocation3], 256
    $region9: #{tpu_custom_call.1} parent=1 // pred_fallthru
      _
    %s27 = sadd.s32 0, 0
    %p28 = scmp.lt.s32.totalorder %s27, 0
    %s29 = scalar_select %p28, %s27, 0
    %s30 = smul.u32 2, %s29
    %p31 = scmp.eq.s32.totalorder 0, 0
    // Predicated region
    $region10: #{tpu_custom_call.1} parent=1 // pred_check
      %p32 = pneg %p31
    $region11: #{tpu_custom_call.1} parent=1 // pred_check_branch
      %34 = sbr.rel (%p32) target = $region13
    $region12: #{tpu_custom_call.1} parent=1 // pred_region
      %vm35 = vcmask 64512
      %36 = vst.msk [vmem:[#allocation5] sm:$0xff] %vm35, 0.0
    $region13: #{tpu_custom_call.1} parent=1 // pred_fallthru
      _
    %v37 = vld [vmem:[#allocation2] sm:$0xff]
    %v38 = vld [vmem:[#allocation2 + $0x8] sm:$0xff]
    %v39 = vld [vmem:[#allocation5] sm:$0xff]
    %40 = vmatprep.subr.mxu0 0.0
    %41 = vmatpush1.xpose.msra.mxu0 0.0
    %42 = vmatprep.subr.mxu0 0.0
    %43 = vmatpush1.xpose.msra.mxu0 0.0
    %44 = vmatprep.subr.mxu0 0.0
    %45 = vmatpush1.xpose.msra.mxu0 0.0
    %46 = vmatprep.subr.mxu0 0.0
    %47 = vmatpush1.xpose.msra.mxu0 0.0
    %48 = vmatprep.subr.mxu0 0.0
    %49 = vmatpush1.xpose.msra.mxu0 0.0
    %50 = vmatprep.subr.mxu0 0.0
    %51 = vmatpush1.xpose.msra.mxu0 0.0
    %52 = vmatprep.subr.mxu0 0.0
    %53 = vmatpush1.xpose.msra.mxu0 0.0
    %54 = vmatprep.subr.mxu0 0.0
    %55 = vmatpush1.xpose.msra.mxu0 0.0
    %56 = vmatprep.subr.mxu0 0.0
    %57 = vmatpush1.xpose.msra.mxu0 0.0
    %58 = vmatprep.subr.mxu0 0.0
    %59 = vmatpush1.xpose.msra.mxu0 0.0
    %60 = vmatprep.subr.mxu0 0.0
    %61 = vmatpush1.xpose.msra.mxu0 0.0
    %62 = vmatprep.subr.mxu0 0.0
    %63 = vmatpush1.xpose.msra.mxu0 0.0
    %64 = vmatprep.subr.mxu0 0.0
    %65 = vmatpush1.xpose.msra.mxu0 0.0
    %66 = vmatprep.subr.mxu0 0.0
    %67 = vmatpush1.xpose.msra.mxu0 0.0
    %68 = vmatprep.subr.mxu0 0.0
    %69 = vmatpush1.xpose.msra.mxu0 0.0
    %70 = vmatprep.subr.mxu0 %v38
    %71 = vmatpush1.xpose.msra.mxu0 %v37
    %72 = vmatprep.subr.mxu0 0.0
    %73 = vmatpush2.xpose.msra.mxu0 0.0
    %74 = vmatprep.subr.mxu0 0.0
    %75 = vmatpush2.xpose.msra.mxu0 0.0
    %76 = vmatprep.subr.mxu0 0.0
    %77 = vmatpush2.xpose.msra.mxu0 0.0
    %78 = vmatprep.subr.mxu0 0.0
    %79 = vmatpush2.xpose.msra.mxu0 0.0
    %80 = vmatprep.subr.mxu0 0.0
    %81 = vmatpush2.xpose.msra.mxu0 0.0
    %82 = vmatprep.subr.mxu0 0.0
    %83 = vmatpush2.xpose.msra.mxu0 0.0
    %84 = vmatprep.subr.mxu0 0.0
    %85 = vmatpush2.xpose.msra.mxu0 0.0
    %86 = vmatprep.subr.mxu0 0.0
    %87 = vmatpush2.xpose.msra.mxu0 0.0
    %88 = vmatprep.subr.mxu0 0.0
    %89 = vmatpush2.xpose.msra.mxu0 0.0
    %90 = vmatprep.subr.mxu0 0.0
    %91 = vmatpush2.xpose.msra.mxu0 0.0
    %92 = vmatprep.subr.mxu0 0.0
    %93 = vmatpush2.xpose.msra.mxu0 0.0
    %94 = vmatprep.subr.mxu0 0.0
    %95 = vmatpush2.xpose.msra.mxu0 0.0
    %96 = vmatprep.subr.mxu0 0.0
    %97 = vmatpush2.xpose.msra.mxu0 0.0
    %98 = vmatprep.subr.mxu0 0.0
    %99 = vmatpush2.xpose.msra.mxu0 0.0
    %100 = vmatprep.subr.mxu0 0.0
    %101 = vmatpush2.xpose.msra.mxu0 0.0
    %102 = vmatprep.subr.mxu0 0.0
    %103 = vmatpush2.xpose.msra.mxu0 0.0
    %104 = vmatprep.mubr.f32.mxu0 %v38
    %105 = vmatmul.mubr.f32.gmra.mxu0 %v37
    %v106 = vpop.f32.mrf.mxu0
    %v107 = vadd.f32 0.0, %v106
    %v108 = vpop.f32.mrf.mxu0
    %109 = vdwg.mxu0
    %v110 = vadd.f32 %v39, %v107
    %vm111 = vcmask 64512
    %112 = vst.msk [vmem:[#allocation5] sm:$0xff] %vm111, %v110
    // Predicated region
    $region14: #{tpu_custom_call.1} parent=1 // pred_check
      %p113 = pneg %p31
    $region15: #{tpu_custom_call.1} parent=1 // pred_check_branch
      %115 = sbr.rel (%p113) target = $region17
    $region16: #{tpu_custom_call.1} parent=1 // pred_region
      %v116 = vld [vmem:[#allocation5] sm:$0xff]
      %v117 = vmul.f32 %v116, 0.00048828125
      %118 = vst.msk [vmem:[#allocation5] sm:$0xff] %vm111, %v117
    $region17: #{tpu_custom_call.1} parent=1 // pred_fallthru
      _
    // Predicated region
    $region18: #{tpu_custom_call.1} parent=1 // pred_check
      _
    $region19: #{tpu_custom_call.1} parent=1 // pred_check_branch
      %120 = sbr.rel (0) target = $region21
    $region20: #{tpu_custom_call.1} parent=1 // pred_region
      %s122 = ssub.s32 128, 128
      %123 = vsyncadd [#allocation4], %s122
      %s125 = sshll.u32 [#allocation5], 4
      %s126 = int_to_ptr.vmem [resolvable:$true] %s125
      %128 = dma.vmem_to_hbm [thread:$0]  %s126, 128, %s1, [#allocation4]
    $region21: #{tpu_custom_call.1} parent=1 // pred_fallthru
      _
    // Predicated region
    $region22: #{tpu_custom_call.1} parent=1 // pred_check
      _
    $region23: #{tpu_custom_call.1} parent=1 // pred_check_branch
      %130 = sbr.rel (0) target = $region25
    $region24: #{tpu_custom_call.1} parent=1 // pred_region
      %131 = dma.done [#allocation4], 128
    $region25: #{tpu_custom_call.1} parent=1 // pred_fallthru
      _
    %132 = vsyncpa [#allocation3], 1
    %133 = vsyncpa [#allocation4], 1

</llo_original>
